<compile_context>
chip_gen: v6e
topology: v6e:2x2x1
jax: 0.10.0
libtpu: 0.0.40
codegen_flags: <defaults>
</compile_context>

<pallas_src>
import functools

import jax
import jax.numpy as jnp
from jax import lax
from jax.experimental import pallas as pl
from jax.experimental.pallas import tpu as pltpu

_LANE = 128


def _round_up(n, m):
    return (n + m - 1) // m * m


def _vmem_scoped_limit_bytes():
    """Generation-aware scoped-VMEM budget with >=25% headroom."""
    cap = 64 * 1024 * 1024                 # conservative fallback (v7x per-TC)
    try:
        cap = int(pltpu.get_tpu_info().vmem_capacity_bytes)
    except Exception:                      # older jax / renamed attribute
        pass
    return (cap * 3) // 4                  # v7x: 48 MiB, v5e/v6e: 96 MiB


def _fused_mlp_scale(avg_p, max_p, w1, b1, w2, b2):
    """sigmoid(MLP(avg) + MLP(max)); both pooled blocks share one matmul pair."""
    bt = avg_p.shape[0]
    p = jnp.concatenate([avg_p, max_p], axis=0)                    # (2*Bt, C)
    h = jnp.dot(p, w1, preferred_element_type=jnp.float32) + b1    # (2*Bt, Ch)
    h = jnp.maximum(h, 0.0)
    y = jnp.dot(h, w2, preferred_element_type=jnp.float32) + b2    # (2*Bt, C)
    return jax.nn.sigmoid(y[:bt] + y[bt:])                         # (Bt, C)


# ----------------------------- Path A: single pass --------------------------
def _single_pass_kernel(x_ref, w1_ref, b1_ref, w2_ref, b2_ref, o_ref, *, hw):
    # Block is (Bt, C, HW) with HW the *true* spatial size (full-dim block),
    # so every logical element is valid: no in-kernel masking needed.
    x = x_ref[...].astype(jnp.float32)
    avg_p = jnp.sum(x, axis=-1) * (1.0 / hw)          # (Bt, C)
    max_p = jnp.max(x, axis=-1)                       # (Bt, C)
    scale = _fused_mlp_scale(avg_p, max_p, w1_ref[...], b1_ref[...],
                             w2_ref[...], b2_ref[...])
    # Re-read x_ref for the multiply instead of keeping the pooled operand
    # live across the MLP (keeps the live vector set small for large tiles).
    o_ref[...] = (x_ref[...] * scale[:, :, None]).astype(o_ref.dtype)


# --------------------- Path B: two-pass, HW-tiled fallback ------------------
def _pooled_scale_kernel(x_ref, w1_ref, b1_ref, w2_ref, b2_ref, scale_ref,
                         sum_acc, max_acc, *, hw, tile):
    t = pl.program_id(1)
    last_t = pl.num_programs(1) - 1

    @pl.when(t == 0)
    def _():
        sum_acc[...] = jnp.zeros_like(sum_acc)
        max_acc[...] = jnp.full_like(max_acc, -jnp.inf)

    rem = hw % tile            # static: valid lanes in the final partial tile

    def accumulate_full():
        x = x_ref[...].astype(jnp.float32)
        sum_acc[...] += jnp.sum(x, axis=-1)
        max_acc[...] = jnp.maximum(max_acc[...], jnp.max(x, axis=-1))

    if rem == 0:
        accumulate_full()
    else:
        @pl.when(t != last_t)
        def _():
            accumulate_full()

        @pl.when(t == last_t)
        def _():
            # Only the final partial tile pays for masking, and only its last
            # (<=128-lane) chunk needs an iota/where; the aligned prefix is
            # reduced unmasked and everything past `rem` is block padding
            # (undefined), so it is simply never read.
            a = (rem // _LANE) * _LANE
            tail = rem - a
            part_sum = None
            part_max = None
            if a > 0:
                xp = x_ref[:, :, :a].astype(jnp.float32)
                part_sum = jnp.sum(xp, axis=-1)
                part_max = jnp.max(xp, axis=-1)
            if tail > 0:
                chunk = x_ref[:, :, a:a + _LANE].astype(jnp.float32)
                lane = lax.broadcasted_iota(jnp.int32, chunk.shape, 2)
                csum = jnp.sum(jnp.where(lane < tail, chunk, 0.0), axis=-1)
                cmax = jnp.max(jnp.where(lane < tail, chunk, -jnp.inf), axis=-1)
                part_sum = csum if part_sum is None else part_sum + csum
                part_max = cmax if part_max is None else jnp.maximum(part_max,
                                                                     cmax)
            sum_acc[...] += part_sum
            max_acc[...] = jnp.maximum(max_acc[...], part_max)

    @pl.when(t == last_t)
    def _():
        avg_p = sum_acc[...] * (1.0 / hw)
        scale = _fused_mlp_scale(avg_p, max_acc[...], w1_ref[...], b1_ref[...],
                                 w2_ref[...], b2_ref[...])
        scale_ref[...] = scale[:, :, None]             # (1, C, 1)


def _apply_scale_kernel(x_ref, scale_ref, o_ref):
    o_ref[...] = (x_ref[...] * scale_ref[...]).astype(o_ref.dtype)


# --------------------------------- wrapper ----------------------------------
def channel_gate(x, w1, b1, w2, b2, *, force_two_pass=False,
                 force_hw_tile=None, donate_x=False):
    """x: (B, C, H, W), f32 or bf16. Weights stored (in, out); biases (1, out).

    Pooling, MLP and the sigmoid scale always run in f32; the output keeps x's
    dtype, so callers may pass bf16 x to halve HBM traffic.
    """
    B, C, H, W = x.shape
    Ch = w1.shape[1]
    HW = H * W
    itemsize = x.dtype.itemsize
    hw_phys = _round_up(HW, _LANE)               # lane-padded VMEM footprint

    scoped = _vmem_scoped_limit_bytes()
    # Leave room for (double-buffered) weight tiles + internal scratch.
    block_budget = max(scoped - (3 << 20), 8 << 20)

    def cp(sem):
        return pltpu.CompilerParams(dimension_semantics=sem,
                                    vmem_limit_bytes=scoped)

    xr = x.reshape(B, C, HW)                     # metadata-only reshape
    weight_args = (w1, b1, w2, b2)

    # Path selection: single pass if a whole (Bt>=1, C, HW) block fits.
    # Temp-aware budget: 2x in + 2x out double buffers + ~1 block of temps.
    row_bytes = C * hw_phys * itemsize
    per_block_a = block_budget // 5
    use_single = (force_hw_tile is None and not force_two_pass
                  and row_bytes <= per_block_a)

    if use_single:
        # Batch-block so each grid step moves ~4 MiB (amortizes the ~0.35 us
        # per-step overhead; small-HW inputs no longer run tiny grid steps).
        bt = max(1, min(B, per_block_a // row_bytes,
                        max(1, (4 << 20) // row_bytes)))
        n_b = pl.cdiv(B, bt)
        w_specs = [
            pl.BlockSpec((C, Ch), lambda i: (0, 0)),
            pl.BlockSpec((1, Ch), lambda i: (0, 0)),
            pl.BlockSpec((Ch, C), lambda i: (0, 0)),
            pl.BlockSpec((1, C), lambda i: (0, 0)),
        ]
        out = pl.pallas_call(
            functools.partial(_single_pass_kernel, hw=HW),
            out_shape=jax.ShapeDtypeStruct((B, C, HW), x.dtype),
            grid=(n_b,),
            in_specs=[pl.BlockSpec((bt, C, HW), lambda i: (i, 0, 0))] + w_specs,
            out_specs=pl.BlockSpec((bt, C, HW), lambda i: (i, 0, 0)),
            compiler_params=cp(("parallel",)),
            input_output_aliases=({0: 0} if donate_x else {}),
        )(xr, *weight_args)
    else:
        def pick_tile(per_block):
            t = (per_block // (C * itemsize)) // _LANE * _LANE
            return int(max(_LANE, min(t, hw_phys)))

        if force_hw_tile is not None:
            tile1 = tile2 = min(_round_up(force_hw_tile, _LANE), hw_phys)
        else:
            # Pass 1's output block is only (1, C, 1), so its VMEM need is
            # ~2 input buffers + temps -> bigger tile than pass 2.
            tile1 = pick_tile(block_budget // 3)
            tile2 = pick_tile(block_budget // 5)
        n_t1 = pl.cdiv(HW, tile1)
        n_t2 = pl.cdiv(HW, tile2)

        w_specs = [
            pl.BlockSpec((C, Ch), lambda b, t: (0, 0)),
            pl.BlockSpec((1, Ch), lambda b, t: (0, 0)),
            pl.BlockSpec((Ch, C), lambda b, t: (0, 0)),
            pl.BlockSpec((1, C), lambda b, t: (0, 0)),
        ]
        # Pass 1: pooled statistics + fused MLP -> per-(batch, channel) scale.
        scale = pl.pallas_call(
            functools.partial(_pooled_scale_kernel, hw=HW, tile=tile1),
            out_shape=jax.ShapeDtypeStruct((B, C, 1), jnp.float32),
            grid=(B, n_t1),
            in_specs=[pl.BlockSpec((1, C, tile1), lambda b, t: (b, 0, t))]
                     + w_specs,
            out_specs=pl.BlockSpec((1, C, 1), lambda b, t: (b, 0, 0)),
            scratch_shapes=[pltpu.VMEM((1, C), jnp.float32),
                            pltpu.VMEM((1, C), jnp.float32)],
            compiler_params=cp(("parallel", "arbitrary")),
        )(xr, *weight_args)

        # Pass 2: re-read x tile-by-tile and apply the channel scale.
        out = pl.pallas_call(
            _apply_scale_kernel,
            out_shape=jax.ShapeDtypeStruct((B, C, HW), x.dtype),
            grid=(B, n_t2),
            in_specs=[pl.BlockSpec((1, C, tile2), lambda b, t: (b, 0, t)),
                      pl.BlockSpec((1, C, 1), lambda b, t: (b, 0, 0))],
            out_specs=pl.BlockSpec((1, C, tile2), lambda b, t: (b, 0, t)),
            compiler_params=cp(("parallel", "parallel")),
            input_output_aliases=({0: 0} if donate_x else {}),
        )(xr, scale)

    return out.reshape(B, C, H, W)


def channel_gate_ref(x, w1, b1, w2, b2):
    """Pure-JAX reference matching the PyTorch forward."""
    avg_p = jnp.mean(x, axis=(2, 3))
    max_p = jnp.max(x, axis=(2, 3))

    def mlp(p):
        h = jnp.maximum(p @ w1 + b1, 0.0)
        return h @ w2 + b2

    scale = jax.nn.sigmoid(mlp(avg_p) + mlp(max_p))
    return x * scale[:, :, None, None]


if __name__ == "__main__":
    key = jax.random.PRNGKey(0)
    C = 32
    reduction_ratio = 16
    Ch = C // reduction_ratio  # hidden = 2

    keys = jax.random.split(key, 8)

    # Deterministic PyTorch-Linear-style init (uniform +-1/sqrt(fan_in)),
    # stored as (in, out) so the kernel does p @ W directly.
    lim1 = 1.0 / jnp.sqrt(C)
    lim2 = 1.0 / jnp.sqrt(Ch)
    w1 = jax.random.uniform(keys[0], (C, Ch), jnp.float32, -lim1, lim1)
    b1 = jax.random.uniform(keys[1], (1, Ch), jnp.float32, -lim1, lim1)
    w2 = jax.random.uniform(keys[2], (Ch, C), jnp.float32, -lim2, lim2)
    b2 = jax.random.uniform(keys[3], (1, C), jnp.float32, -lim2, lim2)

    def check(x, **kw):
        out = jax.block_until_ready(channel_gate(x, w1, b1, w2, b2, **kw))
        ref = channel_gate_ref(x, w1, b1, w2, b2)
        assert out.shape == x.shape and out.dtype == x.dtype
        assert jnp.allclose(out, ref, atol=1e-5, rtol=1e-5), "mismatch"

    # Path A: aligned HW, batch-blocked grid, aliased (donated) input buffer.
    check(jax.random.normal(keys[4], (4, C, 16, 16), jnp.float32),
          donate_x=True)
    # Path A: HW not a multiple of 128 -> full-dim block, no wrapper pad/slice.
    check(jax.random.normal(keys[5], (2, C, 15, 17), jnp.float32))
    # Path B: two-pass HW-tiled fallback with a partial final tile
    # (576 = 2*256 + 64): only the last tile's last chunk is masked.
    check(jax.random.normal(keys[6], (2, C, 24, 24), jnp.float32),
          force_hw_tile=256)

    print("KERNEL_OK")
</pallas_src>

<mosaic_0001>
module attributes {stable_mosaic.version = 11 : i64} {
  func.func @_single_pass_kernel(%arg0: i32, %arg1: memref<4x32x256xf32, #tpu.memory_space<vmem>>, %arg2: memref<32x2xf32, #tpu.memory_space<vmem>>, %arg3: memref<1x2xf32, #tpu.memory_space<vmem>>, %arg4: memref<2x32xf32, #tpu.memory_space<vmem>>, %arg5: memref<1x32xf32, #tpu.memory_space<vmem>>, %arg6: memref<4x32x256xf32, #tpu.memory_space<vmem>>) attributes {dimension_semantics = [#tpu.dimension_semantics<parallel>], iteration_bounds = array<i64: 1>, scalar_prefetch = 0 : i64, scratch_operands = 0 : i64, tpu.core_type = #tpu.core_type<tc>, window_params = [{transform_indices = @transform_0, window_bounds = array<i64: 4, 32, 256>}, {pipeline_mode = #tpu.pipeline_mode<synchronous>, transform_indices = @transform_1, window_bounds = array<i64: 32, 2>}, {pipeline_mode = #tpu.pipeline_mode<synchronous>, transform_indices = @transform_2, window_bounds = array<i64: 1, 2>}, {pipeline_mode = #tpu.pipeline_mode<synchronous>, transform_indices = @transform_3, window_bounds = array<i64: 2, 32>}, {pipeline_mode = #tpu.pipeline_mode<synchronous>, transform_indices = @transform_4, window_bounds = array<i64: 1, 32>}, {transform_indices = @transform_5, window_bounds = array<i64: 4, 32, 256>}]} {
    %c0 = arith.constant 0 : index
    %c0_0 = arith.constant 0 : index
    %c0_1 = arith.constant 0 : index
    %0 = vector.load %arg1[%c0, %c0_0, %c0_1] : memref<4x32x256xf32, #tpu.memory_space<vmem>>, vector<4x32x256xf32>
    %cst = arith.constant dense<0.000000e+00> : vector<4x32xf32>
    %1 = vector.multi_reduction <add>, %0, %cst [2] : vector<4x32x256xf32> to vector<4x32xf32>
    %cst_2 = arith.constant 3.906250e-03 : f32
    %2 = vector.broadcast %cst_2 : f32 to vector<4x32xf32>
    %3 = arith.mulf %1, %2 : vector<4x32xf32>
    %cst_3 = arith.constant dense<0xFF800000> : vector<4x32xf32>
    %4 = vector.multi_reduction <maximumf>, %0, %cst_3 [2] : vector<4x32x256xf32> to vector<4x32xf32>
    %c0_4 = arith.constant 0 : index
    %c0_5 = arith.constant 0 : index
    %5 = vector.load %arg2[%c0_4, %c0_5] : memref<32x2xf32, #tpu.memory_space<vmem>>, vector<32x2xf32>
    %c0_6 = arith.constant 0 : index
    %c0_7 = arith.constant 0 : index
    %6 = vector.load %arg3[%c0_6, %c0_7] : memref<1x2xf32, #tpu.memory_space<vmem>>, vector<1x2xf32>
    %c0_8 = arith.constant 0 : index
    %c0_9 = arith.constant 0 : index
    %7 = vector.load %arg4[%c0_8, %c0_9] : memref<2x32xf32, #tpu.memory_space<vmem>>, vector<2x32xf32>
    %c0_10 = arith.constant 0 : index
    %c0_11 = arith.constant 0 : index
    %8 = vector.load %arg5[%c0_10, %c0_11] : memref<1x32xf32, #tpu.memory_space<vmem>>, vector<1x32xf32>
    %9 = tpu.concatenate %3, %4 in 0 : vector<4x32xf32>, vector<4x32xf32> -> vector<8x32xf32>
    %cst_12 = arith.constant dense<0.000000e+00> : vector<8x2xf32>
    %10 = tpu.matmul %9, %5, %cst_12 {dimension_numbers = #tpu.dot_dimension_numbers<[1], [0], [0], [1], [0, 0, 1, 1], [], []>} : vector<8x32xf32>, vector<32x2xf32>, vector<8x2xf32> -> vector<8x2xf32>
    %11 = vector.broadcast %6 : vector<1x2xf32> to vector<8x2xf32>
    %12 = arith.addf %10, %11 : vector<8x2xf32>
    %cst_13 = arith.constant 0.000000e+00 : f32
    %13 = vector.broadcast %cst_13 : f32 to vector<8x2xf32>
    %14 = arith.maximumf %12, %13 : vector<8x2xf32>
    %cst_14 = arith.constant dense<0.000000e+00> : vector<8x32xf32>
    %15 = tpu.matmul %14, %7, %cst_14 {dimension_numbers = #tpu.dot_dimension_numbers<[1], [0], [0], [1], [0, 0, 1, 1], [], []>} : vector<8x2xf32>, vector<2x32xf32>, vector<8x32xf32> -> vector<8x32xf32>
    %16 = vector.broadcast %8 : vector<1x32xf32> to vector<8x32xf32>
    %17 = arith.addf %15, %16 : vector<8x32xf32>
    %18 = vector.extract_strided_slice %17 {offsets = [0, 0], sizes = [4, 32], strides = [1, 1]} : vector<8x32xf32> to vector<4x32xf32>
    %19 = vector.extract_strided_slice %17 {offsets = [4, 0], sizes = [4, 32], strides = [1, 1]} : vector<8x32xf32> to vector<4x32xf32>
    %20 = arith.addf %18, %19 : vector<4x32xf32>
    %21 = arith.negf %20 : vector<4x32xf32>
    %22 = math.exp %21 : vector<4x32xf32>
    %cst_15 = arith.constant 1.000000e+00 : f32
    %23 = vector.broadcast %cst_15 : f32 to vector<4x32xf32>
    %24 = arith.addf %23, %22 : vector<4x32xf32>
    %25 = arith.divf %23, %24 : vector<4x32xf32>
    %c0_16 = arith.constant 0 : index
    %c0_17 = arith.constant 0 : index
    %c0_18 = arith.constant 0 : index
    %26 = vector.load %arg1[%c0_16, %c0_17, %c0_18] : memref<4x32x256xf32, #tpu.memory_space<vmem>>, vector<4x32x256xf32>
    %27 = vector.shape_cast %25 : vector<4x32xf32> to vector<4x32x1xf32>
    %28 = vector.broadcast %27 : vector<4x32x1xf32> to vector<4x32x256xf32>
    %29 = arith.mulf %26, %28 : vector<4x32x256xf32>
    %c0_19 = arith.constant 0 : index
    %c0_20 = arith.constant 0 : index
    %c0_21 = arith.constant 0 : index
    %30 = vector.load %arg6[%c0_19, %c0_20, %c0_21] : memref<4x32x256xf32, #tpu.memory_space<vmem>>, vector<4x32x256xf32>
    tpu.vector_store %arg6[%c0_19, %c0_20, %c0_21], %29 {strides = array<i32>} : memref<4x32x256xf32, #tpu.memory_space<vmem>>, vector<4x32x256xf32>,
    return
  }
  func.func @transform_0(%arg0: i32) -> (i32, i32, i32) {
    %c0_i32 = arith.constant 0 : i32
    %c0_i32_0 = arith.constant 0 : i32
    %c0_i32_1 = arith.constant 0 : i32
    return %arg0, %c0_i32, %c0_i32_0 : i32, i32, i32
  }
  func.func @transform_1(%arg0: i32) -> (i32, i32) {
    %c0_i32 = arith.constant 0 : i32
    %c0_i32_0 = arith.constant 0 : i32
    %c0_i32_1 = arith.constant 0 : i32
    return %c0_i32, %c0_i32_0 : i32, i32
  }
  func.func @transform_2(%arg0: i32) -> (i32, i32) {
    %c0_i32 = arith.constant 0 : i32
    %c0_i32_0 = arith.constant 0 : i32
    %c0_i32_1 = arith.constant 0 : i32
    return %c0_i32, %c0_i32_0 : i32, i32
  }
  func.func @transform_3(%arg0: i32) -> (i32, i32) {
    %c0_i32 = arith.constant 0 : i32
    %c0_i32_0 = arith.constant 0 : i32
    %c0_i32_1 = arith.constant 0 : i32
    return %c0_i32, %c0_i32_0 : i32, i32
  }
  func.func @transform_4(%arg0: i32) -> (i32, i32) {
    %c0_i32 = arith.constant 0 : i32
    %c0_i32_0 = arith.constant 0 : i32
    %c0_i32_1 = arith.constant 0 : i32
    return %c0_i32, %c0_i32_0 : i32, i32
  }
  func.func @transform_5(%arg0: i32) -> (i32, i32, i32) {
    %c0_i32 = arith.constant 0 : i32
    %c0_i32_0 = arith.constant 0 : i32
    %c0_i32_1 = arith.constant 0 : i32
    return %arg0, %c0_i32, %c0_i32_0 : i32, i32, i32
  }
}

</mosaic_0001>

<llo_original>
// kernel: tpu_custom_call.1
$region0: #{tpu_custom_call.1}
  #allocation0 [shape = 'u32[]', space=smem, size = 0x4, offset = 0x4, fixed_abs, tag = 'smem constant byte address 0x4 - core index']
  #allocation1 [shape = 'u32[144,128]{1,0:T(1,128)}', space=vmem, size = 0x12000, scoped, tag = 'internal scratch']
  %s0 = inlined_call_operand.hbm [shape: f32[4,32,256], index: 0, kind: input, shape index: {}, may-alias: {0,5}]
  %s1 = inlined_call_operand.vmem [shape: f32[32,2], index: 1, kind: input, shape index: {}]
  %s2 = inlined_call_operand.vmem [shape: f32[1,2], index: 2, kind: input, shape index: {}]
  %s3 = inlined_call_operand.vmem [shape: f32[2,32], index: 3, kind: input, shape index: {}]
  %s4 = inlined_call_operand.vmem [shape: f32[1,32], index: 4, kind: input, shape index: {}]
  %s5 = inlined_call_operand.hbm [shape: f32[4,32,256], index: 5, kind: output, shape index: {}, may-alias: {0,5}]
  %s6 = sld [smem:[#allocation0]]
  $region34: #{tpu_custom_call.1} parent=0
    _
  %s8 = ssub.s32 1, %s6
  %s9 = scalar_select 0, %s8, %s6
  $region1: #{tpu_custom_call.1} parent=0
    #allocation2 [shape = 'u8[131072]{0}', space=vmem, size = 0x20000, scoped, tag = 'input window, operand 0, single buffered']
    #allocation3 [shape = 's32[1]{0}', space=sflag, size = 0x4, scoped, tag = 'scoped memory for tpu_custom_call.1']
    #allocation4 [shape = 's32[1]{0}', space=sflag, size = 0x4, scoped, tag = 'scoped memory for tpu_custom_call.1']
    #allocation5 [shape = 'u8[131072]{0}', space=vmem, size = 0x20000, scoped, tag = 'output window, operand 0, single buffered']
    %10 = vsyncpa [#allocation3], 0
    %11 = vsyncpa [#allocation4], 0
    // Predicated region
    $region2: #{tpu_custom_call.1} parent=1 // pred_check
      _
    $region3: #{tpu_custom_call.1} parent=1 // pred_check_branch
      %13 = sbr.rel (0) target = $region5
    $region4: #{tpu_custom_call.1} parent=1 // pred_region
      %s15 = ssub.s32 4096, 4096
      %16 = vsyncadd [#allocation3], %s15
      %s17 = sshll.u32 [#allocation2], 4
      %s18 = int_to_ptr.vmem [resolvable:$true] %s17
      %23 = dma.hbm_to_vmem [thread:$0]  %s0, 4096, %s18, [#allocation3], 256, 256, 16
    $region5: #{tpu_custom_call.1} parent=1 // pred_fallthru
      _
    // Predicated region
    $region6: #{tpu_custom_call.1} parent=1 // pred_check
      _
    $region7: #{tpu_custom_call.1} parent=1 // pred_check_branch
      %25 = sbr.rel (0) target = $region9
    $region8: #{tpu_custom_call.1} parent=1 // pred_region
      _
    $region9: #{tpu_custom_call.1} parent=1 // pred_fallthru
      _
    // Predicated region
    $region10: #{tpu_custom_call.1} parent=1 // pred_check
      _
    $region11: #{tpu_custom_call.1} parent=1 // pred_check_branch
      %27 = sbr.rel (0) target = $region13
    $region12: #{tpu_custom_call.1} parent=1 // pred_region
      _
    $region13: #{tpu_custom_call.1} parent=1 // pred_fallthru
      _
    // Predicated region
    $region14: #{tpu_custom_call.1} parent=1 // pred_check
      _
    $region15: #{tpu_custom_call.1} parent=1 // pred_check_branch
      %29 = sbr.rel (0) target = $region17
    $region16: #{tpu_custom_call.1} parent=1 // pred_region
      _
    $region17: #{tpu_custom_call.1} parent=1 // pred_fallthru
      _
    // Predicated region
    $region18: #{tpu_custom_call.1} parent=1 // pred_check
      _
    $region19: #{tpu_custom_call.1} parent=1 // pred_check_branch
      %31 = sbr.rel (0) target = $region21
    $region20: #{tpu_custom_call.1} parent=1 // pred_region
      _
    $region21: #{tpu_custom_call.1} parent=1 // pred_fallthru
      _
    // Predicated region
    $region22: #{tpu_custom_call.1} parent=1 // pred_check
      _
    $region23: #{tpu_custom_call.1} parent=1 // pred_check_branch
      %33 = sbr.rel (0) target = $region25
    $region24: #{tpu_custom_call.1} parent=1 // pred_region
      %34 = dma.done [#allocation3], 4096
    $region25: #{tpu_custom_call.1} parent=1 // pred_fallthru
      _
    %v35 = vld [vmem:[#allocation2] sm:$0xff]
    %v36 = vld [vmem:[#allocation2 + $0x8] sm:$0xff]
    %v37 = vld [vmem:[#allocation2 + $0x10] sm:$0xff]
    %v38 = vld [vmem:[#allocation2 + $0x18] sm:$0xff]
    %v39 = vld [vmem:[#allocation2 + $0x20] sm:$0xff]
    %v40 = vld [vmem:[#allocation2 + $0x28] sm:$0xff]
    %v41 = vld [vmem:[#allocation2 + $0x30] sm:$0xff]
    %v42 = vld [vmem:[#allocation2 + $0x38] sm:$0xff]
    %v43 = vld [vmem:[#allocation2 + $0x40] sm:$0xff]
    %v44 = vld [vmem:[#allocation2 + $0x48] sm:$0xff]
    %v45 = vld [vmem:[#allocation2 + $0x50] sm:$0xff]
    %v46 = vld [vmem:[#allocation2 + $0x58] sm:$0xff]
    %v47 = vld [vmem:[#allocation2 + $0x60] sm:$0xff]
    %v48 = vld [vmem:[#allocation2 + $0x68] sm:$0xff]
    %v49 = vld [vmem:[#allocation2 + $0x70] sm:$0xff]
    %v50 = vld [vmem:[#allocation2 + $0x78] sm:$0xff]
    %v51 = vld [vmem:[#allocation2 + $0x80] sm:$0xff]
    %v52 = vld [vmem:[#allocation2 + $0x88] sm:$0xff]
    %v53 = vld [vmem:[#allocation2 + $0x90] sm:$0xff]
    %v54 = vld [vmem:[#allocation2 + $0x98] sm:$0xff]
    %v55 = vld [vmem:[#allocation2 + $0xa0] sm:$0xff]
    %v56 = vld [vmem:[#allocation2 + $0xa8] sm:$0xff]
    %v57 = vld [vmem:[#allocation2 + $0xb0] sm:$0xff]
    %v58 = vld [vmem:[#allocation2 + $0xb8] sm:$0xff]
    %v59 = vld [vmem:[#allocation2 + $0xc0] sm:$0xff]
    %v60 = vld [vmem:[#allocation2 + $0xc8] sm:$0xff]
    %v61 = vld [vmem:[#allocation2 + $0xd0] sm:$0xff]
    %v62 = vld [vmem:[#allocation2 + $0xd8] sm:$0xff]
    %v63 = vld [vmem:[#allocation2 + $0xe0] sm:$0xff]
    %v64 = vld [vmem:[#allocation2 + $0xe8] sm:$0xff]
    %v65 = vld [vmem:[#allocation2 + $0xf0] sm:$0xff]
    %v66 = vld [vmem:[#allocation2 + $0xf8] sm:$0xff]
    %v67 = vadd.f32 %v35, %v36
    %68 = vadd.xlane.f32.xlu0 %v67
    %v69 = vpop.xlane.xlu0 %68
    %v70 = vadd.f32 %v37, %v38
    %71 = vadd.xlane.f32.xlu0 %v70
    %v72 = vpop.xlane.xlu0 %71
    %v73 = vadd.f32 %v39, %v40
    %74 = vadd.xlane.f32.xlu0 %v73
    %v75 = vpop.xlane.xlu0 %74
    %v76 = vadd.f32 %v41, %v42
    %77 = vadd.xlane.f32.xlu0 %v76
    %v78 = vpop.xlane.xlu0 %77
    %v79 = vadd.f32 %v43, %v44
    %80 = vadd.xlane.f32.xlu0 %v79
    %v81 = vpop.xlane.xlu0 %80
    %v82 = vadd.f32 %v45, %v46
    %83 = vadd.xlane.f32.xlu0 %v82
    %v84 = vpop.xlane.xlu0 %83
    %v85 = vadd.f32 %v47, %v48
    %86 = vadd.xlane.f32.xlu0 %v85
    %v87 = vpop.xlane.xlu0 %86
    %v88 = vadd.f32 %v49, %v50
    %89 = vadd.xlane.f32.xlu0 %v88
    %v90 = vpop.xlane.xlu0 %89
    %v91 = vadd.f32 %v51, %v52
    %92 = vadd.xlane.f32.xlu0 %v91
    %v93 = vpop.xlane.xlu0 %92
    %v94 = vadd.f32 %v53, %v54
    %95 = vadd.xlane.f32.xlu0 %v94
    %v96 = vpop.xlane.xlu0 %95
    %v97 = vadd.f32 %v55, %v56
    %98 = vadd.xlane.f32.xlu0 %v97
    %v99 = vpop.xlane.xlu0 %98
    %v100 = vadd.f32 %v57, %v58
    %101 = vadd.xlane.f32.xlu0 %v100
    %v102 = vpop.xlane.xlu0 %101
    %v103 = vadd.f32 %v59, %v60
    %104 = vadd.xlane.f32.xlu0 %v103
    %v105 = vpop.xlane.xlu0 %104
    %v106 = vadd.f32 %v61, %v62
    %107 = vadd.xlane.f32.xlu0 %v106
    %v108 = vpop.xlane.xlu0 %107
    %v109 = vadd.f32 %v63, %v64
    %110 = vadd.xlane.f32.xlu0 %v109
    %v111 = vpop.xlane.xlu0 %110
    %v112 = vadd.f32 %v65, %v66
    %113 = vadd.xlane.f32.xlu0 %v112
    %v114 = vpop.xlane.xlu0 %113
    %v115 = vmul.f32 %v69, 0.00390625
    %v116 = vmul.f32 %v72, 0.00390625
    %v117 = vmul.f32 %v75, 0.00390625
    %v118 = vmul.f32 %v78, 0.00390625
    %v119 = vmul.f32 %v81, 0.00390625
    %v120 = vmul.f32 %v84, 0.00390625
    %v121 = vmul.f32 %v87, 0.00390625
    %v122 = vmul.f32 %v90, 0.00390625
    %v123 = vmul.f32 %v93, 0.00390625
    %v124 = vmul.f32 %v96, 0.00390625
    %v125 = vmul.f32 %v99, 0.00390625
    %v126 = vmul.f32 %v102, 0.00390625
    %v127 = vmul.f32 %v105, 0.00390625
    %v128 = vmul.f32 %v108, 0.00390625
    %v129 = vmul.f32 %v111, 0.00390625
    %v130 = vmul.f32 %v114, 0.00390625
    %v131 = vmax.f32 %v35, %v36
    %132 = vmax.xlane.f32.xlu0 %v131
    %v133 = vpop.xlane.xlu0 %132
    %v134 = vmax.f32 %v37, %v38
    %135 = vmax.xlane.f32.xlu0 %v134
    %v136 = vpop.xlane.xlu0 %135
    %v137 = vmax.f32 %v39, %v40
    %138 = vmax.xlane.f32.xlu0 %v137
    %v139 = vpop.xlane.xlu0 %138
    %v140 = vmax.f32 %v41, %v42
    %141 = vmax.xlane.f32.xlu0 %v140
    %v142 = vpop.xlane.xlu0 %141
    %v143 = vmax.f32 %v43, %v44
    %144 = vmax.xlane.f32.xlu0 %v143
    %v145 = vpop.xlane.xlu0 %144
    %v146 = vmax.f32 %v45, %v46
    %147 = vmax.xlane.f32.xlu0 %v146
    %v148 = vpop.xlane.xlu0 %147
    %v149 = vmax.f32 %v47, %v48
    %150 = vmax.xlane.f32.xlu0 %v149
    %v151 = vpop.xlane.xlu0 %150
    %v152 = vmax.f32 %v49, %v50
    %153 = vmax.xlane.f32.xlu0 %v152
    %v154 = vpop.xlane.xlu0 %153
    %v155 = vmax.f32 %v51, %v52
    %156 = vmax.xlane.f32.xlu0 %v155
    %v157 = vpop.xlane.xlu0 %156
    %v158 = vmax.f32 %v53, %v54
    %159 = vmax.xlane.f32.xlu0 %v158
    %v160 = vpop.xlane.xlu0 %159
    %v161 = vmax.f32 %v55, %v56
    %162 = vmax.xlane.f32.xlu0 %v161
    %v163 = vpop.xlane.xlu0 %162
    %v164 = vmax.f32 %v57, %v58
    %165 = vmax.xlane.f32.xlu0 %v164
    %v166 = vpop.xlane.xlu0 %165
    %v167 = vmax.f32 %v59, %v60
    %168 = vmax.xlane.f32.xlu0 %v167
    %v169 = vpop.xlane.xlu0 %168
    %v170 = vmax.f32 %v61, %v62
    %171 = vmax.xlane.f32.xlu0 %v170
    %v172 = vpop.xlane.xlu0 %171
    %v173 = vmax.f32 %v63, %v64
    %174 = vmax.xlane.f32.xlu0 %v173
    %v175 = vpop.xlane.xlu0 %174
    %v176 = vmax.f32 %v65, %v66
    %177 = vmax.xlane.f32.xlu0 %v176
    %v178 = vpop.xlane.xlu0 %177
    %v179 = vld [vmem:[%s1] sm:$0xff]
    %v180 = vld [vmem:[%s1 + $0x8] sm:$0xff]
    %v181 = vld [vmem:[%s1 + $0x10] sm:$0xff]
    %v182 = vld [vmem:[%s1 + $0x18] sm:$0xff]
    %v183 = vld [vmem:[%s2] sm:$0x1]
    %v184 = vld [vmem:[%s3] sm:$0x3]
    %v185 = vld [vmem:[%s4] sm:$0x1]
    %v202 = vlaneseq
    %v203 = vand.u32 %v202, 127
    %v204 = vlaneseq
    %v205 = vshrl.u32 %v204, 7
    %v206 = vsub.s32 %v203, %v205
    %v207 = vrot.slane %v115, %v206
    %v208 = vadd.s32 %v203, 4294967288
    %v209 = vlaneseq
    %v210 = vshrl.u32 %v209, 7
    %v211 = vsub.s32 %v208, %v210
    %v212 = vrot.slane %v116, %v211
    %vm213 = vcmask 130112
    %v214 = vsel %vm213, %v212, %v207
    %v215 = vadd.s32 %v203, 4294967280
    %v216 = vlaneseq
    %v217 = vshrl.u32 %v216, 7
    %v218 = vsub.s32 %v215, %v217
    %v219 = vrot.slane %v117, %v218
    %vm220 = vcmask 195712
    %v221 = vsel %vm220, %v219, %v214
    %v222 = vadd.s32 %v203, 4294967272
    %v223 = vlaneseq
    %v224 = vshrl.u32 %v223, 7
    %v225 = vsub.s32 %v222, %v224
    %v226 = vrot.slane %v118, %v225
    %vm227 = vcmask 261312
    %v228 = vsel %vm227, %v226, %v221
    %v229 = vlaneseq
    %v230 = vshrl.u32 %v229, 7
    %v231 = vsub.s32 %v203, %v230
    %v232 = vrot.slane %v119, %v231
    %v233 = vlaneseq
    %v234 = vshrl.u32 %v233, 7
    %v235 = vsub.s32 %v208, %v234
    %v236 = vrot.slane %v120, %v235
    %v237 = vsel %vm213, %v236, %v232
    %v238 = vlaneseq
    %v239 = vshrl.u32 %v238, 7
    %v240 = vsub.s32 %v215, %v239
    %v241 = vrot.slane %v121, %v240
    %v242 = vsel %vm220, %v241, %v237
    %v243 = vlaneseq
    %v244 = vshrl.u32 %v243, 7
    %v245 = vsub.s32 %v222, %v244
    %v246 = vrot.slane %v122, %v245
    %v247 = vsel %vm227, %v246, %v242
    %v248 = vlaneseq
    %v249 = vshrl.u32 %v248, 7
    %v250 = vsub.s32 %v203, %v249
    %v251 = vrot.slane %v123, %v250
    %v252 = vlaneseq
    %v253 = vshrl.u32 %v252, 7
    %v254 = vsub.s32 %v208, %v253
    %v255 = vrot.slane %v124, %v254
    %v256 = vsel %vm213, %v255, %v251
    %v257 = vlaneseq
    %v258 = vshrl.u32 %v257, 7
    %v259 = vsub.s32 %v215, %v258
    %v260 = vrot.slane %v125, %v259
    %v261 = vsel %vm220, %v260, %v256
    %v262 = vlaneseq
    %v263 = vshrl.u32 %v262, 7
    %v264 = vsub.s32 %v222, %v263
    %v265 = vrot.slane %v126, %v264
    %v266 = vsel %vm227, %v265, %v261
    %v267 = vlaneseq
    %v268 = vshrl.u32 %v267, 7
    %v269 = vsub.s32 %v203, %v268
    %v270 = vrot.slane %v127, %v269
    %v271 = vlaneseq
    %v272 = vshrl.u32 %v271, 7
    %v273 = vsub.s32 %v208, %v272
    %v274 = vrot.slane %v128, %v273
    %v275 = vsel %vm213, %v274, %v270
    %v276 = vlaneseq
    %v277 = vshrl.u32 %v276, 7
    %v278 = vsub.s32 %v215, %v277
    %v279 = vrot.slane %v129, %v278
    %v280 = vsel %vm220, %v279, %v275
    %v281 = vlaneseq
    %v282 = vshrl.u32 %v281, 7
    %v283 = vsub.s32 %v222, %v282
    %v284 = vrot.slane %v130, %v283
    %v285 = vsel %vm227, %v284, %v280
    %vm286 = vcmask 1041409
    %v287 = vsel %vm286, %v247, %v228
    %vm288 = vcmask 1042434
    %v289 = vsel %vm288, %v266, %v287
    %vm290 = vcmask 1043459
    %v291 = vsel %vm290, %v285, %v289
    %v309 = vlaneseq
    %v310 = vshrl.u32 %v309, 7
    %v311 = vsub.s32 %v203, %v310
    %v312 = vrot.slane %v133, %v311
    %v313 = vlaneseq
    %v314 = vshrl.u32 %v313, 7
    %v315 = vsub.s32 %v208, %v314
    %v316 = vrot.slane %v136, %v315
    %v317 = vsel %vm213, %v316, %v312
    %v318 = vlaneseq
    %v319 = vshrl.u32 %v318, 7
    %v320 = vsub.s32 %v215, %v319
    %v321 = vrot.slane %v139, %v320
    %v322 = vsel %vm220, %v321, %v317
    %v323 = vlaneseq
    %v324 = vshrl.u32 %v323, 7
    %v325 = vsub.s32 %v222, %v324
    %v326 = vrot.slane %v142, %v325
    %v327 = vsel %vm227, %v326, %v322
    %v328 = vlaneseq
    %v329 = vshrl.u32 %v328, 7
    %v330 = vsub.s32 %v203, %v329
    %v331 = vrot.slane %v145, %v330
    %v332 = vlaneseq
    %v333 = vshrl.u32 %v332, 7
    %v334 = vsub.s32 %v208, %v333
    %v335 = vrot.slane %v148, %v334
    %v336 = vsel %vm213, %v335, %v331
    %v337 = vlaneseq
    %v338 = vshrl.u32 %v337, 7
    %v339 = vsub.s32 %v215, %v338
    %v340 = vrot.slane %v151, %v339
    %v341 = vsel %vm220, %v340, %v336
    %v342 = vlaneseq
    %v343 = vshrl.u32 %v342, 7
    %v344 = vsub.s32 %v222, %v343
    %v345 = vrot.slane %v154, %v344
    %v346 = vsel %vm227, %v345, %v341
    %v347 = vlaneseq
    %v348 = vshrl.u32 %v347, 7
    %v349 = vsub.s32 %v203, %v348
    %v350 = vrot.slane %v157, %v349
    %v351 = vlaneseq
    %v352 = vshrl.u32 %v351, 7
    %v353 = vsub.s32 %v208, %v352
    %v354 = vrot.slane %v160, %v353
    %v355 = vsel %vm213, %v354, %v350
    %v356 = vlaneseq
    %v357 = vshrl.u32 %v356, 7
    %v358 = vsub.s32 %v215, %v357
    %v359 = vrot.slane %v163, %v358
    %v360 = vsel %vm220, %v359, %v355
    %v361 = vlaneseq
    %v362 = vshrl.u32 %v361, 7
    %v363 = vsub.s32 %v222, %v362
    %v364 = vrot.slane %v166, %v363
    %v365 = vsel %vm227, %v364, %v360
    %v366 = vlaneseq
    %v367 = vshrl.u32 %v366, 7
    %v368 = vsub.s32 %v203, %v367
    %v369 = vrot.slane %v169, %v368
    %v370 = vlaneseq
    %v371 = vshrl.u32 %v370, 7
    %v372 = vsub.s32 %v208, %v371
    %v373 = vrot.slane %v172, %v372
    %v374 = vsel %vm213, %v373, %v369
    %v375 = vlaneseq
    %v376 = vshrl.u32 %v375, 7
    %v377 = vsub.s32 %v215, %v376
    %v378 = vrot.slane %v175, %v377
    %v379 = vsel %vm220, %v378, %v374
    %v380 = vlaneseq
    %v381 = vshrl.u32 %v380, 7
    %v382 = vsub.s32 %v222, %v381
    %v383 = vrot.slane %v178, %v382
    %v384 = vsel %vm227, %v383, %v379
    %vm385 = vcmask 1045509
    %v386 = vsel %vm385, %v346, %v327
    %vm387 = vcmask 1046534
    %v388 = vsel %vm387, %v365, %v386
    %vm389 = vcmask 1047559
    %v390 = vsel %vm389, %v384, %v388
    %vm392 = vcmask 1043456
    %v393 = vsel %vm392, %v291, %v390
    %v395 = vlaneseq
    %v396 = vshrl.u32 %v395, 7
    %v397 = vsub.s32 0, %v396
    %v398 = vrot.slane %v183, %v397
    %vm400 = vcmask 261120
    %v402 = vsel %vm400, %v393, 0
    %404 = vmatprep.subr.mxu0 0.0
    %405 = vmatpush1.msra.mxu0 0.0
    %406 = vmatprep.subr.mxu0 0.0
    %407 = vmatpush1.msra.mxu0 0.0
    %408 = vmatprep.subr.mxu0 0.0
    %409 = vmatpush1.msra.mxu0 0.0
    %410 = vmatprep.subr.mxu0 0.0
    %411 = vmatpush1.msra.mxu0 0.0
    %412 = vmatprep.subr.mxu0 0.0
    %413 = vmatpush1.msra.mxu0 0.0
    %414 = vmatprep.subr.mxu0 0.0
    %415 = vmatpush1.msra.mxu0 0.0
    %416 = vmatprep.subr.mxu0 0.0
    %417 = vmatpush1.msra.mxu0 0.0
    %418 = vmatprep.subr.mxu0 0.0
    %419 = vmatpush1.msra.mxu0 0.0
    %420 = vmatprep.subr.mxu0 0.0
    %421 = vmatpush1.msra.mxu0 0.0
    %422 = vmatprep.subr.mxu0 0.0
    %423 = vmatpush1.msra.mxu0 0.0
    %424 = vmatprep.subr.mxu0 0.0
    %425 = vmatpush1.msra.mxu0 0.0
    %426 = vmatprep.subr.mxu0 0.0
    %427 = vmatpush1.msra.mxu0 0.0
    %428 = vmatprep.subr.mxu0 0.0
    %429 = vmatpush1.msra.mxu0 %v182
    %430 = vmatprep.subr.mxu0 0.0
    %431 = vmatpush1.msra.mxu0 %v181
    %432 = vmatprep.subr.mxu0 0.0
    %433 = vmatpush1.msra.mxu0 %v180
    %434 = vmatprep.subr.mxu0 0.0
    %435 = vmatpush1.msra.mxu0 %v179
    %436 = vmatprep.subr.mxu0 0.0
    %437 = vmatpush2.msra.mxu0 0.0
    %438 = vmatprep.subr.mxu0 0.0
    %439 = vmatpush2.msra.mxu0 0.0
    %440 = vmatprep.subr.mxu0 0.0
    %441 = vmatpush2.msra.mxu0 0.0
    %442 = vmatprep.subr.mxu0 0.0
    %443 = vmatpush2.msra.mxu0 0.0
    %444 = vmatprep.subr.mxu0 0.0
    %445 = vmatpush2.msra.mxu0 0.0
    %446 = vmatprep.subr.mxu0 0.0
    %447 = vmatpush2.msra.mxu0 0.0
    %448 = vmatprep.subr.mxu0 0.0
    %449 = vmatpush2.msra.mxu0 0.0
    %450 = vmatprep.subr.mxu0 0.0
    %451 = vmatpush2.msra.mxu0 0.0
    %452 = vmatprep.subr.mxu0 0.0
    %453 = vmatpush2.msra.mxu0 0.0
    %454 = vmatprep.subr.mxu0 0.0
    %455 = vmatpush2.msra.mxu0 0.0
    %456 = vmatprep.subr.mxu0 0.0
    %457 = vmatpush2.msra.mxu0 0.0
    %458 = vmatprep.subr.mxu0 0.0
    %459 = vmatpush2.msra.mxu0 0.0
    %460 = vmatprep.subr.mxu0 0.0
    %461 = vmatpush2.msra.mxu0 0.0
    %462 = vmatprep.subr.mxu0 0.0
    %463 = vmatpush2.msra.mxu0 0.0
    %464 = vmatprep.subr.mxu0 0.0
    %465 = vmatpush2.msra.mxu0 0.0
    %466 = vmatprep.subr.mxu0 0.0
    %467 = vmatpush2.msra.mxu0 0.0
    %468 = vmatprep.mubr.f32.mxu0 0.0
    %469 = vmatmul.mubr.f32.gmra.mxu0 %v402
    %v470 = vpop.f32.mrf.mxu0
    %v471 = vadd.f32 %v398, %v470
    %v472 = vpop.f32.mrf.mxu0
    %473 = vdwg.mxu0
    %v474 = vmax.f32 %v471, 0.0
    %v476 = vlaneseq
    %v477 = vshrl.u32 %v476, 7
    %v478 = vsub.s32 0, %v477
    %v479 = vrot.slane %v185, %v478
    %vm481 = vcmask 15360
    %v483 = vsel %vm481, %v474, 0
    %vm485 = vcmask 1041408
    %v487 = vsel %vm485, %v184, 0
    %489 = vmatprep.subr.mxu0 0.0
    %490 = vmatpush1.msra.mxu0 0.0
    %491 = vmatprep.subr.mxu0 0.0
    %492 = vmatpush1.msra.mxu0 0.0
    %493 = vmatprep.subr.mxu0 0.0
    %494 = vmatpush1.msra.mxu0 0.0
    %495 = vmatprep.subr.mxu0 0.0
    %496 = vmatpush1.msra.mxu0 0.0
    %497 = vmatprep.subr.mxu0 0.0
    %498 = vmatpush1.msra.mxu0 0.0
    %499 = vmatprep.subr.mxu0 0.0
    %500 = vmatpush1.msra.mxu0 0.0
    %501 = vmatprep.subr.mxu0 0.0
    %502 = vmatpush1.msra.mxu0 0.0
    %503 = vmatprep.subr.mxu0 0.0
    %504 = vmatpush1.msra.mxu0 0.0
    %505 = vmatprep.subr.mxu0 0.0
    %506 = vmatpush1.msra.mxu0 0.0
    %507 = vmatprep.subr.mxu0 0.0
    %508 = vmatpush1.msra.mxu0 0.0
    %509 = vmatprep.subr.mxu0 0.0
    %510 = vmatpush1.msra.mxu0 0.0
    %511 = vmatprep.subr.mxu0 0.0
    %512 = vmatpush1.msra.mxu0 0.0
    %513 = vmatprep.subr.mxu0 0.0
    %514 = vmatpush1.msra.mxu0 0.0
    %515 = vmatprep.subr.mxu0 0.0
    %516 = vmatpush1.msra.mxu0 0.0
    %517 = vmatprep.subr.mxu0 0.0
    %518 = vmatpush1.msra.mxu0 0.0
    %519 = vmatprep.subr.mxu0 0.0
    %520 = vmatpush1.msra.mxu0 %v487
    %521 = vmatprep.subr.mxu0 0.0
    %522 = vmatpush2.msra.mxu0 0.0
    %523 = vmatprep.subr.mxu0 0.0
    %524 = vmatpush2.msra.mxu0 0.0
    %525 = vmatprep.subr.mxu0 0.0
    %526 = vmatpush2.msra.mxu0 0.0
    %527 = vmatprep.subr.mxu0 0.0
    %528 = vmatpush2.msra.mxu0 0.0
    %529 = vmatprep.subr.mxu0 0.0
    %530 = vmatpush2.msra.mxu0 0.0
    %531 = vmatprep.subr.mxu0 0.0
    %532 = vmatpush2.msra.mxu0 0.0
    %533 = vmatprep.subr.mxu0 0.0
    %534 = vmatpush2.msra.mxu0 0.0
    %535 = vmatprep.subr.mxu0 0.0
    %536 = vmatpush2.msra.mxu0 0.0
    %537 = vmatprep.subr.mxu0 0.0
    %538 = vmatpush2.msra.mxu0 0.0
    %539 = vmatprep.subr.mxu0 0.0
    %540 = vmatpush2.msra.mxu0 0.0
    %541 = vmatprep.subr.mxu0 0.0
    %542 = vmatpush2.msra.mxu0 0.0
    %543 = vmatprep.subr.mxu0 0.0
    %544 = vmatpush2.msra.mxu0 0.0
    %545 = vmatprep.subr.mxu0 0.0
    %546 = vmatpush2.msra.mxu0 0.0
    %547 = vmatprep.subr.mxu0 0.0
    %548 = vmatpush2.msra.mxu0 0.0
    %549 = vmatprep.subr.mxu0 0.0
    %550 = vmatpush2.msra.mxu0 0.0
    %551 = vmatprep.subr.mxu0 0.0
    %552 = vmatpush2.msra.mxu0 0.0
    %553 = vmatprep.mubr.f32.mxu0 0.0
    %554 = vmatmul.mubr.f32.gmra.mxu0 %v483
    %v555 = vpop.f32.mrf.mxu0
    %v556 = vadd.f32 %v479, %v555
    %v557 = vpop.f32.mrf.mxu0
    %558 = vdwg.mxu0
    %v560 = vrot.slane %v556, 4
    %v562 = vadd.f32 %v556, %v560
    %v563 = vxor.u32 %v562, 2147483648
    %v564 = vmul.f32 %v563, 1.442695
    %v565 = vpow.pop %v564
    %v566 = vadd.f32 %v565, 1.0
    %v567 = vrcp.pop %v566
    %v568 = vmul.f32 1.0, %v567
    %v569 = vlaneseq
    %v570 = vshrl.u32 %v569, 7
    %v571 = vsub.s32 0, %v570
    %v572 = vrot.slane %v568, %v571
    %574 = vbcast.lane.b32.xlu0 %v572, 256
    %v575 = vpop.permute.xlu0 %574
    %s577 = sor.u32 256, 8
    %578 = vbcast.lane.b32.xlu0 %v572, %s577
    %v579 = vpop.permute.xlu0 %578
    %s581 = sor.u32 256, 16
    %582 = vbcast.lane.b32.xlu0 %v572, %s581
    %v583 = vpop.permute.xlu0 %582
    %s585 = sor.u32 256, 24
    %586 = vbcast.lane.b32.xlu0 %v572, %s585
    %v587 = vpop.permute.xlu0 %586
    %v588 = vlaneseq
    %v589 = vshrl.u32 %v588, 7
    %v590 = vsub.s32 1, %v589
    %v591 = vrot.slane %v568, %v590
    %593 = vbcast.lane.b32.xlu0 %v591, 256
    %v594 = vpop.permute.xlu0 %593
    %s596 = sor.u32 256, 8
    %597 = vbcast.lane.b32.xlu0 %v591, %s596
    %v598 = vpop.permute.xlu0 %597
    %s600 = sor.u32 256, 16
    %601 = vbcast.lane.b32.xlu0 %v591, %s600
    %v602 = vpop.permute.xlu0 %601
    %s604 = sor.u32 256, 24
    %605 = vbcast.lane.b32.xlu0 %v591, %s604
    %v606 = vpop.permute.xlu0 %605
    %v607 = vlaneseq
    %v608 = vshrl.u32 %v607, 7
    %v609 = vsub.s32 2, %v608
    %v610 = vrot.slane %v568, %v609
    %612 = vbcast.lane.b32.xlu0 %v610, 256
    %v613 = vpop.permute.xlu0 %612
    %s615 = sor.u32 256, 8
    %616 = vbcast.lane.b32.xlu0 %v610, %s615
    %v617 = vpop.permute.xlu0 %616
    %s619 = sor.u32 256, 16
    %620 = vbcast.lane.b32.xlu0 %v610, %s619
    %v621 = vpop.permute.xlu0 %620
    %s623 = sor.u32 256, 24
    %624 = vbcast.lane.b32.xlu0 %v610, %s623
    %v625 = vpop.permute.xlu0 %624
    %v626 = vlaneseq
    %v627 = vshrl.u32 %v626, 7
    %v628 = vsub.s32 3, %v627
    %v629 = vrot.slane %v568, %v628
    %631 = vbcast.lane.b32.xlu0 %v629, 256
    %v632 = vpop.permute.xlu0 %631
    %s634 = sor.u32 256, 8
    %635 = vbcast.lane.b32.xlu0 %v629, %s634
    %v636 = vpop.permute.xlu0 %635
    %s638 = sor.u32 256, 16
    %639 = vbcast.lane.b32.xlu0 %v629, %s638
    %v640 = vpop.permute.xlu0 %639
    %s642 = sor.u32 256, 24
    %643 = vbcast.lane.b32.xlu0 %v629, %s642
    %v644 = vpop.permute.xlu0 %643
    %v645 = vmul.f32 %v35, %v575
    %v646 = vmul.f32 %v36, %v575
    %v647 = vmul.f32 %v37, %v579
    %v648 = vmul.f32 %v38, %v579
    %v649 = vmul.f32 %v39, %v583
    %v650 = vmul.f32 %v40, %v583
    %v651 = vmul.f32 %v41, %v587
    %v652 = vmul.f32 %v42, %v587
    %v653 = vmul.f32 %v43, %v594
    %v654 = vmul.f32 %v44, %v594
    %v655 = vmul.f32 %v45, %v598
    %v656 = vmul.f32 %v46, %v598
    %v657 = vmul.f32 %v47, %v602
    %v658 = vmul.f32 %v48, %v602
    %v659 = vmul.f32 %v49, %v606
    %v660 = vmul.f32 %v50, %v606
    %v661 = vmul.f32 %v51, %v613
    %v662 = vmul.f32 %v52, %v613
    %v663 = vmul.f32 %v53, %v617
    %v664 = vmul.f32 %v54, %v617
    %v665 = vmul.f32 %v55, %v621
    %v666 = vmul.f32 %v56, %v621
    %v667 = vmul.f32 %v57, %v625
    %v668 = vmul.f32 %v58, %v625
    %v669 = vmul.f32 %v59, %v632
    %v670 = vmul.f32 %v60, %v632
    %v671 = vmul.f32 %v61, %v636
    %v672 = vmul.f32 %v62, %v636
    %v673 = vmul.f32 %v63, %v640
    %v674 = vmul.f32 %v64, %v640
    %v675 = vmul.f32 %v65, %v644
    %v676 = vmul.f32 %v66, %v644
    %677 = vst [vmem:[#allocation5] sm:$0xff] %v645
    %678 = vst [vmem:[#allocation5 + $0x8] sm:$0xff] %v646
    %679 = vst [vmem:[#allocation5 + $0x10] sm:$0xff] %v647
    %680 = vst [vmem:[#allocation5 + $0x18] sm:$0xff] %v648
    %681 = vst [vmem:[#allocation5 + $0x20] sm:$0xff] %v649
    %682 = vst [vmem:[#allocation5 + $0x28] sm:$0xff] %v650
    %683 = vst [vmem:[#allocation5 + $0x30] sm:$0xff] %v651
    %684 = vst [vmem:[#allocation5 + $0x38] sm:$0xff] %v652
    %685 = vst [vmem:[#allocation5 + $0x40] sm:$0xff] %v653
    %686 = vst [vmem:[#allocation5 + $0x48] sm:$0xff] %v654
    %687 = vst [vmem:[#allocation5 + $0x50] sm:$0xff] %v655
    %688 = vst [vmem:[#allocation5 + $0x58] sm:$0xff] %v656
    %689 = vst [vmem:[#allocation5 + $0x60] sm:$0xff] %v657
    %690 = vst [vmem:[#allocation5 + $0x68] sm:$0xff] %v658
    %691 = vst [vmem:[#allocation5 + $0x70] sm:$0xff] %v659
    %692 = vst [vmem:[#allocation5 + $0x78] sm:$0xff] %v660
    %693 = vst [vmem:[#allocation5 + $0x80] sm:$0xff] %v661
    %694 = vst [vmem:[#allocation5 + $0x88] sm:$0xff] %v662
    %695 = vst [vmem:[#allocation5 + $0x90] sm:$0xff] %v663
    %696 = vst [vmem:[#allocation5 + $0x98] sm:$0xff] %v664
    %697 = vst [vmem:[#allocation5 + $0xa0] sm:$0xff] %v665
    %698 = vst [vmem:[#allocation5 + $0xa8] sm:$0xff] %v666
    %699 = vst [vmem:[#allocation5 + $0xb0] sm:$0xff] %v667
    %700 = vst [vmem:[#allocation5 + $0xb8] sm:$0xff] %v668
    %701 = vst [vmem:[#allocation5 + $0xc0] sm:$0xff] %v669
    %702 = vst [vmem:[#allocation5 + $0xc8] sm:$0xff] %v670
    %703 = vst [vmem:[#allocation5 + $0xd0] sm:$0xff] %v671
    %704 = vst [vmem:[#allocation5 + $0xd8] sm:$0xff] %v672
    %705 = vst [vmem:[#allocation5 + $0xe0] sm:$0xff] %v673
    %706 = vst [vmem:[#allocation5 + $0xe8] sm:$0xff] %v674
    %707 = vst [vmem:[#allocation5 + $0xf0] sm:$0xff] %v675
    %708 = vst [vmem:[#allocation5 + $0xf8] sm:$0xff] %v676
    // Predicated region
    $region26: #{tpu_custom_call.1} parent=1 // pred_check
      _
    $region27: #{tpu_custom_call.1} parent=1 // pred_check_branch
      %710 = sbr.rel (0) target = $region29
    $region28: #{tpu_custom_call.1} parent=1 // pred_region
      %s712 = ssub.s32 4096, 4096
      %713 = vsyncadd [#allocation4], %s712
      %s714 = sshll.u32 [#allocation5], 4
      %s715 = int_to_ptr.vmem [resolvable:$true] %s714
      %720 = dma.vmem_to_hbm [thread:$0]  %s715, 4096, %s5, [#allocation4], 256, 256, 16
    $region29: #{tpu_custom_call.1} parent=1 // pred_fallthru
      _
    // Predicated region
    $region30: #{tpu_custom_call.1} parent=1 // pred_check
      _
    $region31: #{tpu_custom_call.1} parent=1 // pred_check_branch
      %722 = sbr.rel (0) target = $region33
    $region32: #{tpu_custom_call.1} parent=1 // pred_region
      %723 = dma.done [#allocation4], 4096
    $region33: #{tpu_custom_call.1} parent=1 // pred_fallthru
      _
    %724 = vsyncpa [#allocation3], 1
    %725 = vsyncpa [#allocation4], 1

</llo_original>
